<compile_context>
chip_gen: v6e
topology: v6e:2x2x1
jax: 0.10.0
libtpu: 0.0.40
codegen_flags: <defaults>
</compile_context>

<pallas_src>
import jax
import jax.numpy as jnp
from jax import lax
from jax.experimental import pallas as pl
from jax.experimental.pallas import tpu as pltpu


def _focal_loss_kernel(gamma, eps, n_rows, tile_n, has_tail):
    """Returns a kernel computing the per-block (unnormalized) loss sum."""
    gamma = float(gamma)
    eps = float(eps)

    def kernel(logits_ref, target_ref, out_ref):
        x = logits_ref[...].astype(jnp.float32)            # (tile_n, C)
        t = target_ref[...]                                 # (tile_n, 1) int32

        # Row-wise softmax statistics only (no full (tile_n, C) softmax/log/div).
        m = jnp.max(x, axis=1, keepdims=True)               # (tile_n, 1)
        s = jnp.sum(jnp.exp(x - m), axis=1, keepdims=True)  # (tile_n, 1)

        # Gather the target-class logit via a one-hot masked sum (no dynamic
        # gather on TPU); compare against a class-index iota.
        cls = lax.broadcasted_iota(jnp.int32, x.shape, 1)   # (tile_n, C)
        x_t = jnp.sum(jnp.where(cls == t, x, 0.0), axis=1, keepdims=True)

        # Target-class probability; clamp BEFORE the log and the focal factor,
        # exactly matching torch's clamp-then-log / clamped gather.
        pt = jnp.exp(x_t - m) / s                           # (tile_n, 1)
        pt = jnp.clip(pt, eps, 1.0 - eps)
        nll = -jnp.log(pt)
        om = 1.0 - pt

        # gamma is a Python constant: special-case common values (float power
        # would lower to exp(gamma * log(.)) = 2 EUP ops).
        if gamma == 0.0:
            loss = nll
        elif gamma == 1.0:
            loss = nll * om
        elif gamma == 2.0:
            loss = nll * (om * om)
        elif gamma == float(int(gamma)) and 0.0 < gamma <= 8.0:
            f = om
            for _ in range(int(gamma) - 1):
                f = f * om
            loss = nll * f
        else:
            loss = nll * (om ** gamma)

        # Mask padded tail rows so they contribute nothing to the sum.
        if has_tail:
            row = pl.program_id(0) * tile_n + lax.broadcasted_iota(
                jnp.int32, (tile_n, 1), 0)
            loss = jnp.where(row < n_rows, loss, 0.0)

        block_sum = jnp.sum(loss)                            # scalar
        out_ref[...] = jnp.broadcast_to(
            jnp.reshape(block_sum, (1, 1)), out_ref.shape).astype(out_ref.dtype)

    return kernel


def _choose_tile_n(n, c, itemsize):
    """Pick a row-tile so one logits block is ~4 MiB (x2 for double buffering)."""
    budget = 4 * 1024 * 1024
    t = budget // max(1, c * itemsize)
    t = int(max(8, min(1024, t)))
    t -= t % 8
    n_pad8 = -(-n // 8) * 8
    return max(8, min(t, n_pad8))


def focal_loss_without_one_hot(logits, target, gamma=0.0, eps=1e-7, tile_n=None):
    """logits: (N, C) float; target: (N,) int class indices. Returns scalar f32.

    Optional: callers streaming large f32 logits may cast them to bf16 before
    this call (kernel math stays f32) to halve HBM traffic; not done here to
    keep exact parity with the PyTorch reference.
    """
    n, c = logits.shape
    itemsize = jnp.dtype(logits.dtype).itemsize

    if tile_n is None:
        tile_n = _choose_tile_n(n, c, itemsize)
    tile_n = max(8, (int(tile_n) // 8) * 8)

    num_blocks = -(-n // tile_n)
    n_pad = num_blocks * tile_n
    has_tail = n_pad != n

    logits_p = logits
    target2d = target.astype(jnp.int32).reshape(n, 1)
    if has_tail:
        logits_p = jnp.pad(logits, ((0, n_pad - n), (0, 0)))
        target2d = jnp.pad(target2d, ((0, n_pad - n), (0, 0)))

    # Each grid step owns one lane-dense (8, 128) output block holding its
    # partial sum (broadcast); grid is fully parallel (megacore / 2-TC friendly).
    partials = pl.pallas_call(
        _focal_loss_kernel(gamma, eps, n, tile_n, has_tail),
        out_shape=jax.ShapeDtypeStruct((8, 128 * num_blocks), jnp.float32),
        grid=(num_blocks,),
        in_specs=[
            pl.BlockSpec((tile_n, c), lambda i: (i, 0)),
            pl.BlockSpec((tile_n, 1), lambda i: (i, 0)),
        ],
        out_specs=pl.BlockSpec((8, 128), lambda i: (0, i)),
        compiler_params=pltpu.CompilerParams(
            dimension_semantics=("parallel",),
            vmem_limit_bytes=32 * 1024 * 1024,
        ),
    )(logits_p, target2d)

    block_sums = partials[0].reshape(num_blocks, 128)[:, 0]   # one value per block
    return jnp.sum(block_sums) / jnp.float32(n)


def _reference(logits, target, gamma=0.0, eps=1e-7):
    p = jax.nn.softmax(logits.astype(jnp.float32), axis=1)
    p = jnp.clip(p, eps, 1.0 - eps)
    n = logits.shape[0]
    pt = p[jnp.arange(n), target]
    nll = -jnp.log(pt)
    return jnp.mean(nll * (1.0 - pt) ** gamma)


if __name__ == "__main__":
    key = jax.random.PRNGKey(0)

    def check(n, c, gamma, tile_n=None):
        k1, k2 = jax.random.split(jax.random.fold_in(key, n * 1000 + c))
        logits = jax.random.normal(k1, (n, c), dtype=jnp.float32)
        target = jax.random.randint(k2, (n,), 0, c, dtype=jnp.int32)

        out = focal_loss_without_one_hot(logits, target, gamma=gamma, tile_n=tile_n)
        out = jax.block_until_ready(out)

        ref = _reference(logits, target, gamma=gamma)
        assert jnp.allclose(out, ref, rtol=1e-5, atol=1e-6), (n, c, gamma, out, ref)

    # single block, gamma=2 (common focal setting)
    check(8, 16, 2.0)
    # multi-block grid (4 tiles) with masked tail rows
    check(100, 16, 2.0, tile_n=32)
    # module default gamma=0, odd shapes + tail masking
    check(37, 24, 0.0, tile_n=16)

    print("KERNEL_OK")
</pallas_src>

<mosaic_0001>
module attributes {stable_mosaic.version = 11 : i64} {
  func.func @kernel(%arg0: i32, %arg1: memref<8x16xf32, #tpu.memory_space<vmem>>, %arg2: memref<8x1xi32, #tpu.memory_space<vmem>>, %arg3: memref<8x128xf32, #tpu.memory_space<vmem>>) attributes {dimension_semantics = [#tpu.dimension_semantics<parallel>], iteration_bounds = array<i64: 1>, scalar_prefetch = 0 : i64, scratch_operands = 0 : i64, tpu.core_type = #tpu.core_type<tc>, window_params = [{transform_indices = @transform_0, window_bounds = array<i64: 8, 16>}, {transform_indices = @transform_1, window_bounds = array<i64: 8, 1>}, {transform_indices = @transform_2, window_bounds = array<i64: 8, 128>}]} {
    %c0 = arith.constant 0 : index
    %c0_0 = arith.constant 0 : index
    %0 = vector.load %arg1[%c0, %c0_0] : memref<8x16xf32, #tpu.memory_space<vmem>>, vector<8x16xf32>
    %c0_1 = arith.constant 0 : index
    %c0_2 = arith.constant 0 : index
    %1 = vector.load %arg2[%c0_1, %c0_2] : memref<8x1xi32, #tpu.memory_space<vmem>>, vector<8x1xi32>
    %cst = arith.constant dense<0xFF800000> : vector<8xf32>
    %2 = vector.multi_reduction <maximumf>, %0, %cst [1] : vector<8x16xf32> to vector<8xf32>
    %3 = vector.shape_cast %2 : vector<8xf32> to vector<8x1xf32>
    %4 = vector.broadcast %3 : vector<8x1xf32> to vector<8x16xf32>
    %5 = arith.subf %0, %4 : vector<8x16xf32>
    %6 = math.exp %5 : vector<8x16xf32>
    %cst_3 = arith.constant dense<0.000000e+00> : vector<8xf32>
    %7 = vector.multi_reduction <add>, %6, %cst_3 [1] : vector<8x16xf32> to vector<8xf32>
    %8 = vector.shape_cast %7 : vector<8xf32> to vector<8x1xf32>
    %9 = tpu.iota {dimensions = array<i32: 1>} : vector<8x16xi32>
    %10 = vector.broadcast %1 : vector<8x1xi32> to vector<8x16xi32>
    %11 = arith.cmpi eq, %9, %10 : vector<8x16xi32>
    %cst_4 = arith.constant 0.000000e+00 : f32
    %12 = vector.broadcast %cst_4 : f32 to vector<8x16xf32>
    %13 = arith.select %11, %0, %12 : vector<8x16xi1>, vector<8x16xf32>
    %cst_5 = arith.constant dense<0.000000e+00> : vector<8xf32>
    %14 = vector.multi_reduction <add>, %13, %cst_5 [1] : vector<8x16xf32> to vector<8xf32>
    %15 = vector.shape_cast %14 : vector<8xf32> to vector<8x1xf32>
    %16 = arith.subf %15, %3 : vector<8x1xf32>
    %17 = math.exp %16 : vector<8x1xf32>
    %18 = arith.divf %17, %8 : vector<8x1xf32>
    %cst_6 = arith.constant 1.000000e-07 : f32
    %cst_7 = arith.constant 0.99999988 : f32
    %19 = vector.broadcast %cst_6 : f32 to vector<8x1xf32>
    %20 = arith.maximumf %19, %18 : vector<8x1xf32>
    %21 = vector.broadcast %cst_7 : f32 to vector<8x1xf32>
    %22 = arith.minimumf %21, %20 : vector<8x1xf32>
    %23 = math.log %22 : vector<8x1xf32>
    %cst_8 = arith.constant 0.000000e+00 : f32
    %24 = vector.broadcast %cst_8 : f32 to vector<8x1xf32>
    %25 = arith.subf %24, %23 : vector<8x1xf32>
    %cst_9 = arith.constant 1.000000e+00 : f32
    %26 = vector.broadcast %cst_9 : f32 to vector<8x1xf32>
    %27 = arith.subf %26, %22 : vector<8x1xf32>
    %28 = arith.mulf %27, %27 : vector<8x1xf32>
    %29 = arith.mulf %25, %28 : vector<8x1xf32>
    %30 = vector.shape_cast %29 : vector<8x1xf32> to vector<1x8x1xf32>
    %cst_10 = arith.constant dense<0.000000e+00> : vector<1xf32>
    %31 = vector.multi_reduction <add>, %30, %cst_10 [1, 2] : vector<1x8x1xf32> to vector<1xf32>
    %32 = vector.shape_cast %31 : vector<1xf32> to vector<1x1x1xf32>
    %33 = vector.extract %32[0, 0, 0] : f32 from vector<1x1x1xf32>
    %34 = vector.broadcast %33 : f32 to vector<1x1xf32>
    %35 = vector.shape_cast %34 : vector<1x1xf32> to vector<1x1xf32>
    %36 = vector.broadcast %35 : vector<1x1xf32> to vector<8x128xf32>
    %c0_11 = arith.constant 0 : index
    %c0_12 = arith.constant 0 : index
    %37 = vector.load %arg3[%c0_11, %c0_12] : memref<8x128xf32, #tpu.memory_space<vmem>>, vector<8x128xf32>
    tpu.vector_store %arg3[%c0_11, %c0_12], %36 {strides = array<i32>} : memref<8x128xf32, #tpu.memory_space<vmem>>, vector<8x128xf32>,
    return
  }
  func.func @transform_0(%arg0: i32) -> (i32, i32) {
    %c0_i32 = arith.constant 0 : i32
    %c0_i32_0 = arith.constant 0 : i32
    return %arg0, %c0_i32 : i32, i32
  }
  func.func @transform_1(%arg0: i32) -> (i32, i32) {
    %c0_i32 = arith.constant 0 : i32
    %c0_i32_0 = arith.constant 0 : i32
    return %arg0, %c0_i32 : i32, i32
  }
  func.func @transform_2(%arg0: i32) -> (i32, i32) {
    %c0_i32 = arith.constant 0 : i32
    %c0_i32_0 = arith.constant 0 : i32
    return %c0_i32, %arg0 : i32, i32
  }
}

</mosaic_0001>

<llo_original>
// kernel: tpu_custom_call.1
$region0: #{tpu_custom_call.1}
  #allocation0 [shape = 'u32[]', space=smem, size = 0x4, offset = 0x4, fixed_abs, tag = 'smem constant byte address 0x4 - core index']
  #allocation1 [shape = 'u32[144,128]{1,0:T(1,128)}', space=vmem, size = 0x12000, scoped, tag = 'internal scratch']
  %s0 = inlined_call_operand.vmem [shape: f32[8,16], index: 0, kind: input, shape index: {}]
  %s1 = inlined_call_operand.vmem [shape: s32[8,1], index: 1, kind: input, shape index: {}]
  %s2 = inlined_call_operand.hbm [shape: f32[8,128], index: 2, kind: output, shape index: {}]
  %s3 = sld [smem:[#allocation0]]
  $region18: #{tpu_custom_call.1} parent=0
    _
  %s5 = ssub.s32 1, %s3
  %s6 = scalar_select 0, %s5, %s3
  $region1: #{tpu_custom_call.1} parent=0
    #allocation2 [shape = 'u8[4096]{0}', space=vmem, size = 0x1000, scoped, tag = 'output window, operand 0, single buffered']
    #allocation3 [shape = 's32[1]{0}', space=sflag, size = 0x4, scoped, tag = 'scoped memory for tpu_custom_call.1']
    %7 = vsyncpa [#allocation3], 0
    // Predicated region
    $region2: #{tpu_custom_call.1} parent=1 // pred_check
      _
    $region3: #{tpu_custom_call.1} parent=1 // pred_check_branch
      %9 = sbr.rel (0) target = $region5
    $region4: #{tpu_custom_call.1} parent=1 // pred_region
      _
    $region5: #{tpu_custom_call.1} parent=1 // pred_fallthru
      _
    // Predicated region
    $region6: #{tpu_custom_call.1} parent=1 // pred_check
      _
    $region7: #{tpu_custom_call.1} parent=1 // pred_check_branch
      %11 = sbr.rel (0) target = $region9
    $region8: #{tpu_custom_call.1} parent=1 // pred_region
      _
    $region9: #{tpu_custom_call.1} parent=1 // pred_fallthru
      _
    %v12 = vld [vmem:[%s0] sm:$0xff]
    %v13 = vld [vmem:[%s1] sm:$0xff]
    %vm14 = vcmask 130048
    %v15 = vsel %vm14, %v12, -inf
    %16 = vmax.xlane.f32.xlu0 %v15
    %v17 = vpop.xlane.xlu0 %16
    %v18 = vsub.f32 %v12, %v17
    %v19 = vmul.f32 %v18, 1.442695
    %v20 = vpow.pop %v19
    %v21 = vsel %vm14, %v20, 0.0
    %22 = vadd.xlane.f32.xlu0 %v21
    %v23 = vpop.xlane.xlu0 %22
    %v24 = vlaneseq
    %v25 = vand.u32 %v24, 127
    %26 = vset.pattern.permute.xlu0 0
    %27 = vperm.xlu0 %26, %v13
    %v28 = vpop.permute.xlu0 %27
    %vm29 = vcmp.eq.s32.totalorder %v25, %v28
    %v30 = vsel %vm29, %v12, 0.0
    %v31 = vsel %vm14, %v30, 0.0
    %32 = vadd.xlane.f32.xlu0 %v31
    %v33 = vpop.xlane.xlu0 %32
    %v34 = vsub.f32 %v33, %v17
    %v35 = vmul.f32 %v34, 1.442695
    %v36 = vpow.pop %v35
    %v37 = vrcp.pop %v23
    %v38 = vmul.f32 %v36, %v37
    %v39 = vmax.f32 %v38, 1e-07
    %v40 = vmin.f32 %v39, 0.9999999
    %v41 = vlog2.pop %v40
    %v42 = vmul.f32 %v41, 0.6931472
    %v43 = vsub.f32 0.0, %v42
    %v44 = vsub.f32 1.0, %v40
    %v45 = vmul.f32 %v44, %v44
    %v46 = vmul.f32 %v43, %v45
    %vm47 = vcmask 7168
    %v48 = vsel %vm47, %v46, 0.0
    %49 = vadd.xlane.f32.xlu0 %v48
    %v50 = vpop.xlane.xlu0 %49
    %v51 = vrot.slane %v50, 4
    %v52 = vadd.f32 %v50, %v51
    %v53 = vrot.slane %v52, 2
    %v54 = vadd.f32 %v52, %v53
    %v55 = vrot.slane %v54, 1
    %v56 = vadd.f32 %v54, %v55
    %s57 = vtos %v56
    %v58 = vstv %s57
    %59 = vst [vmem:[#allocation2] sm:$0xff] %v58
    // Predicated region
    $region10: #{tpu_custom_call.1} parent=1 // pred_check
      _
    $region11: #{tpu_custom_call.1} parent=1 // pred_check_branch
      %61 = sbr.rel (0) target = $region13
    $region12: #{tpu_custom_call.1} parent=1 // pred_region
      %s63 = ssub.s32 128, 128
      %64 = vsyncadd [#allocation3], %s63
      %s66 = sshll.u32 [#allocation2], 4
      %s67 = int_to_ptr.vmem [resolvable:$true] %s66
      %69 = dma.vmem_to_hbm [thread:$0]  %s67, 128, %s2, [#allocation3]
    $region13: #{tpu_custom_call.1} parent=1 // pred_fallthru
      _
    // Predicated region
    $region14: #{tpu_custom_call.1} parent=1 // pred_check
      _
    $region15: #{tpu_custom_call.1} parent=1 // pred_check_branch
      %71 = sbr.rel (0) target = $region17
    $region16: #{tpu_custom_call.1} parent=1 // pred_region
      %72 = dma.done [#allocation3], 128
    $region17: #{tpu_custom_call.1} parent=1 // pred_fallthru
      _
    %73 = vsyncpa [#allocation3], 1

</llo_original>
